<compile_context>
chip_gen: v5e
topology: v5e:2x2
jax: 0.10.0
libtpu: 0.0.40
codegen_flags: <defaults>
</compile_context>

<pallas_src>
import functools

import jax
import jax.numpy as jnp
from jax.experimental import pallas as pl
from jax.experimental.pallas import tpu as pltpu


def _focal_loss_kernel(B, C, tile_b, tile_c, tiles_per_split, num_c_tiles,
                       logits_ref, targets_ref, alpha_ref, gamma_ref, af_ref,
                       out_ref, m_scr, l_scr, tgt_scr, acc_scr):
    s = pl.program_id(0)          # parallel split axis (megacore / 2-TC chips)
    t = pl.program_id(1)          # batch-tile accumulation axis ("arbitrary")
    c = pl.program_id(2)          # class-tile axis ("arbitrary", innermost)

    # Per-split loss accumulator (element-wise adds only; reduced once at end).
    @pl.when(jnp.logical_and(t == 0, c == 0))
    def _():
        acc_scr[...] = jnp.zeros(acc_scr.shape, acc_scr.dtype)

    # Per-(batch tile) online-logsumexp state, reset at every new batch tile.
    @pl.when(c == 0)
    def _():
        m_scr[...] = jnp.full(m_scr.shape, -jnp.inf, m_scr.dtype)
        l_scr[...] = jnp.zeros(l_scr.shape, l_scr.dtype)
        tgt_scr[...] = jnp.zeros(tgt_scr.shape, tgt_scr.dtype)

    # Stream logits in native dtype, upcast in-register.
    logits = logits_ref[...].astype(jnp.float32)          # (tile_b, tile_c)
    targets = targets_ref[...]                             # (tile_b, 1) int32

    col = jax.lax.broadcasted_iota(jnp.int32, (tile_b, tile_c), 1)
    cls = c * tile_c + col                                  # global class ids
    if C % tile_c != 0:
        # Ragged final class block: neutralize garbage OOB columns (select,
        # not multiply, so garbage NaN/Inf never propagates).
        logits = jnp.where(cls < C, logits, -jnp.inf)

    # Target-logit gather restricted to this class tile (masked sum).
    onehot = cls == targets
    tgt_scr[...] += jnp.sum(jnp.where(onehot, logits, 0.0), axis=1,
                            keepdims=True)

    # Online (running-max) logsumexp over class tiles.
    m_prev = m_scr[...]
    m_new = jnp.maximum(m_prev, jnp.max(logits, axis=1, keepdims=True))
    l_scr[...] = (l_scr[...] * jnp.exp(m_prev - m_new)
                  + jnp.sum(jnp.exp(logits - m_new), axis=1, keepdims=True))
    m_scr[...] = m_new

    # Finalize per-row loss once per batch tile (cheap (tile_b, 1) math).
    @pl.when(c == num_c_tiles - 1)
    def _():
        lse = m_scr[...] + jnp.log(l_scr[...])
        ce = lse - tgt_scr[...]                             # (tile_b, 1)
        pt = jnp.exp(-ce)
        base = 1.0 - pt
        safe_base = jnp.maximum(base, 1e-30)
        focal_term = jnp.where(base <= 0.0, 0.0,
                               jnp.exp(gamma_ref[...] * jnp.log(safe_base)))
        focal_loss = alpha_ref[...] * focal_term * ce
        af = jnp.clip(af_ref[0], 0.0, 1.0)                  # SMEM scalar
        combined = af * focal_loss + (1.0 - af) * ce

        # Mask rows that come from the (un-padded) partial last batch block.
        row = jax.lax.broadcasted_iota(jnp.int32, (tile_b, 1), 0)
        global_row = (s * tiles_per_split + t) * tile_b + row
        combined = jnp.where(global_row < B, combined, 0.0)
        acc_scr[...] += combined

    # One cross-vreg reduce + (1,1,1) store per split, off the hot path.
    @pl.when(jnp.logical_and(t == tiles_per_split - 1, c == num_c_tiles - 1))
    def _():
        out_ref[...] = jnp.sum(acc_scr[...]).reshape(out_ref.shape)


def _default_num_splits():
    # A parallel leading axis only pays off on chips with 2 TCs / megacore.
    try:
        kind = jax.devices()[0].device_kind.lower()
    except Exception:
        return 1
    return 2 if any(tag in kind for tag in ("v7", "7x", "v4", "v5p")) else 1


def adaptive_focal_loss_v2(logits, targets, log_alpha, log_gamma,
                           adaptive_factor, *, tile_b=None, tile_c=None,
                           num_splits=None, target_block_bytes=2 << 20):
    """logits: (B, C) float, targets: (B,) int -> scalar f32 mean loss."""
    B, C = logits.shape
    itemsize = jnp.dtype(logits.dtype).itemsize
    sub = max(8, 32 // itemsize)        # sublane granularity: 8 f32/16 bf16/32 i8

    # --- class tiling -------------------------------------------------------
    if tile_c is None:
        tile_c = C if C <= 4096 else 2048          # 2048 is a multiple of 128
    else:
        tile_c = int(min(tile_c, C))
        if tile_c != C and tile_c % 128 != 0:
            raise ValueError("tile_c must equal C or be a multiple of 128")
    num_c_tiles = int(pl.cdiv(C, tile_c))

    # --- batch tiling: aim for ~1-2 MiB logits blocks -----------------------
    if tile_b is None:
        tb = max(sub, (target_block_bytes // (tile_c * itemsize) // sub) * sub)
        tile_b = int(min(tb, 8192))
    else:
        tile_b = int(max(sub, pl.cdiv(int(tile_b), sub) * sub))
    tile_b = int(min(tile_b, pl.cdiv(B, sub) * sub))

    num_tiles = int(pl.cdiv(B, tile_b))
    if num_splits is None:
        num_splits = _default_num_splits()
    num_splits = int(max(1, min(int(num_splits), num_tiles)))
    if num_tiles % num_splits != 0:     # avoid fully-OOB blocks: exact split only
        num_splits = 1
    tiles_per_split = num_tiles // num_splits

    # --- wrapper-side gathers (hoisted out of the (tile_b, C) hot path) -----
    targets_i32 = targets.astype(jnp.int32)
    alpha_t2d = jnp.exp(log_alpha.astype(jnp.float32))[targets_i32].reshape(B, 1)
    gamma_t2d = jnp.exp(log_gamma.astype(jnp.float32))[targets_i32].reshape(B, 1)
    targets2d = targets_i32.reshape(B, 1)
    af1d = jnp.asarray(adaptive_factor, jnp.float32).reshape(1)

    # --- VMEM budget / limit (generation-safe: <= 48 MiB) --------------------
    est_vmem = (2 * tile_b * tile_c * itemsize      # double-buffered logits
                + 4 * tile_b * tile_c * 4           # in-kernel f32 temporaries
                + 2 * tile_b * 12                   # targets / alpha / gamma
                + 4 * tile_b * 4                    # per-row scratch
                + (1 << 16))
    vmem_limit = int(min(48 << 20, max(32 << 20, int(est_vmem * 1.5))))

    cost = pl.CostEstimate(
        flops=8 * B * C,
        transcendentals=B * C + 6 * B,
        bytes_accessed=B * C * itemsize + B * 16 + 2 * C * 4 + 16,
    )

    T = tiles_per_split
    kernel = functools.partial(_focal_loss_kernel, B, C, tile_b, tile_c, T,
                               num_c_tiles)

    partials = pl.pallas_call(
        kernel,
        out_shape=jax.ShapeDtypeStruct((num_splits, 1, 1), jnp.float32),
        grid_spec=pltpu.PrefetchScalarGridSpec(
            num_scalar_prefetch=0,
            grid=(num_splits, tiles_per_split, num_c_tiles),
            in_specs=[
                pl.BlockSpec((tile_b, tile_c), lambda s, t, c: (s * T + t, c)),
                pl.BlockSpec((tile_b, 1), lambda s, t, c: (s * T + t, 0)),
                pl.BlockSpec((tile_b, 1), lambda s, t, c: (s * T + t, 0)),
                pl.BlockSpec((tile_b, 1), lambda s, t, c: (s * T + t, 0)),
                pl.BlockSpec(memory_space=pltpu.MemorySpace.SMEM),
            ],
            out_specs=pl.BlockSpec((1, 1, 1), lambda s, t, c: (s, 0, 0)),
            scratch_shapes=[
                pltpu.VMEM((tile_b, 1), jnp.float32),   # running max m
                pltpu.VMEM((tile_b, 1), jnp.float32),   # running sumexp l
                pltpu.VMEM((tile_b, 1), jnp.float32),   # target logit
                pltpu.VMEM((tile_b, 1), jnp.float32),   # per-row loss accum
            ],
        ),
        compiler_params=pltpu.CompilerParams(
            dimension_semantics=("parallel", "arbitrary", "arbitrary"),
            vmem_limit_bytes=vmem_limit,
        ),
        cost_estimate=cost,
    )(logits, targets2d, alpha_t2d, gamma_t2d, af1d)

    return jnp.sum(partials) / jnp.float32(B)


def _reference_loss(logits, targets, log_alpha, log_gamma, adaptive_factor):
    # Pure-JAX reference mirroring the PyTorch forward pass.
    logits = logits.astype(jnp.float32)
    logp = jax.nn.log_softmax(logits, axis=-1)
    tgt = targets.astype(jnp.int32)
    ce = -jnp.take_along_axis(logp, tgt[:, None], axis=-1)[:, 0]
    pt = jnp.exp(-ce)
    alpha_t = jnp.exp(log_alpha)[tgt]
    gamma_t = jnp.exp(log_gamma)[tgt]
    focal = alpha_t * (1.0 - pt) ** gamma_t * ce
    af = jnp.clip(adaptive_factor, 0.0, 1.0)
    return jnp.mean(af * focal + (1.0 - af) * ce)


if __name__ == "__main__":
    key = jax.random.PRNGKey(0)
    af = jnp.float32(0.5)   # module init: adaptive_factor = 0.5

    # Case 1: module-default params (alpha_init=1, gamma_init=2), tiny batch,
    # single batch tile, single class block.
    C1, B1 = 32, 8
    k1, k2, key = jax.random.split(key, 3)
    la1 = jnp.log(jnp.ones((C1,), jnp.float32) * 1.0)
    lg1 = jnp.log(jnp.ones((C1,), jnp.float32) * 2.0)
    logits1 = jax.random.normal(k1, (B1, C1), jnp.float32)
    targets1 = jax.random.randint(k2, (B1,), 0, C1, jnp.int32)
    out1 = jax.block_until_ready(
        adaptive_focal_loss_v2(logits1, targets1, la1, lg1, af))
    ref1 = _reference_loss(logits1, targets1, la1, lg1, af)
    assert jnp.allclose(out1, ref1, rtol=1e-5, atol=1e-5), (out1, ref1)

    # Case 2: ragged batch (B=40, tile_b=16 -> partial last block, no jnp.pad),
    # per-class learned alpha/gamma exercise the wrapper-side gathers.
    C2, B2 = 32, 40
    k1, k2, k3, k4, key = jax.random.split(key, 5)
    la2 = jax.random.normal(k3, (C2,), jnp.float32) * 0.2
    lg2 = jax.random.normal(k4, (C2,), jnp.float32) * 0.2 + jnp.log(2.0)
    logits2 = jax.random.normal(k1, (B2, C2), jnp.float32)
    targets2 = jax.random.randint(k2, (B2,), 0, C2, jnp.int32)
    out2 = jax.block_until_ready(
        adaptive_focal_loss_v2(logits2, targets2, la2, lg2, af, tile_b=16))
    ref2 = _reference_loss(logits2, targets2, la2, lg2, af)
    assert jnp.allclose(out2, ref2, rtol=1e-5, atol=1e-5), (out2, ref2)

    # Case 3: tiled class axis (C=200, tile_c=128 -> ragged final class block),
    # exercises the online logsumexp path used for vocab-scale C.
    C3, B3 = 200, 24
    k1, k2, k3, k4, key = jax.random.split(key, 5)
    la3 = jax.random.normal(k3, (C3,), jnp.float32) * 0.2
    lg3 = jax.random.normal(k4, (C3,), jnp.float32) * 0.2 + jnp.log(2.0)
    logits3 = jax.random.normal(k1, (B3, C3), jnp.float32)
    targets3 = jax.random.randint(k2, (B3,), 0, C3, jnp.int32)
    out3 = jax.block_until_ready(
        adaptive_focal_loss_v2(logits3, targets3, la3, lg3, af,
                               tile_b=8, tile_c=128))
    ref3 = _reference_loss(logits3, targets3, la3, lg3, af)
    assert jnp.allclose(out3, ref3, rtol=1e-5, atol=1e-5), (out3, ref3)

    # Case 4: bf16 logits streamed in native dtype, upcast in-kernel.
    C4, B4 = 32, 20
    k1, k2, key = jax.random.split(key, 3)
    la4 = jnp.log(jnp.ones((C4,), jnp.float32) * 1.0)
    lg4 = jnp.log(jnp.ones((C4,), jnp.float32) * 2.0)
    logits4 = jax.random.normal(k1, (B4, C4), jnp.float32).astype(jnp.bfloat16)
    targets4 = jax.random.randint(k2, (B4,), 0, C4, jnp.int32)
    out4 = jax.block_until_ready(
        adaptive_focal_loss_v2(logits4, targets4, la4, lg4, af))
    ref4 = _reference_loss(logits4.astype(jnp.float32), targets4, la4, lg4, af)
    assert jnp.allclose(out4, ref4, rtol=1e-3, atol=1e-3), (out4, ref4)

    print("KERNEL_OK")
</pallas_src>

<mosaic_0001>
module attributes {stable_mosaic.version = 11 : i64} {
  func.func @_focal_loss_kernel(%arg0: i32, %arg1: i32, %arg2: i32, %arg3: memref<8x32xf32, #tpu.memory_space<vmem>>, %arg4: memref<8x1xi32, #tpu.memory_space<vmem>>, %arg5: memref<8x1xf32, #tpu.memory_space<vmem>>, %arg6: memref<8x1xf32, #tpu.memory_space<vmem>>, %arg7: memref<1xf32, #tpu.memory_space<smem>>, %arg8: memref<1x1x1xf32, #tpu.memory_space<vmem>>, %arg9: memref<8x1xf32, #tpu.memory_space<vmem>>, %arg10: memref<8x1xf32, #tpu.memory_space<vmem>>, %arg11: memref<8x1xf32, #tpu.memory_space<vmem>>, %arg12: memref<8x1xf32, #tpu.memory_space<vmem>>) attributes {dimension_semantics = [#tpu.dimension_semantics<parallel>, #tpu.dimension_semantics<arbitrary>, #tpu.dimension_semantics<arbitrary>], iteration_bounds = array<i64: 1, 1, 1>, scalar_prefetch = 0 : i64, scratch_operands = 4 : i64, tpu.core_type = #tpu.core_type<tc>, window_params = [{transform_indices = @transform_0, window_bounds = array<i64: 8, 32>}, {transform_indices = @transform_1, window_bounds = array<i64: 8, 1>}, {transform_indices = @transform_2, window_bounds = array<i64: 8, 1>}, {transform_indices = @transform_3, window_bounds = array<i64: 8, 1>}, {transform_indices = @transform_4, window_bounds = array<i64: 1>}, {transform_indices = @transform_5, window_bounds = array<i64: 1, 1, 1>}]} {
    %c0_i32 = arith.constant 0 : i32
    %0 = arith.cmpi eq, %arg1, %c0_i32 : i32
    %c0_i32_0 = arith.constant 0 : i32
    %1 = arith.cmpi eq, %arg2, %c0_i32_0 : i32
    %2 = arith.andi %0, %1 : i1
    %3 = arith.extui %2 : i1 to i32
    %c0_i32_1 = arith.constant 0 : i32
    %4 = arith.cmpi ne, %3, %c0_i32_1 : i32
    scf.if %4 {
      %cst_27 = arith.constant 0.000000e+00 : f32
      %47 = vector.broadcast %cst_27 : f32 to vector<8x1xf32>
      %c0_28 = arith.constant 0 : index
      %c0_29 = arith.constant 0 : index
      %48 = vector.load %arg12[%c0_28, %c0_29] : memref<8x1xf32, #tpu.memory_space<vmem>>, vector<8x1xf32>
      tpu.vector_store %arg12[%c0_28, %c0_29], %47 {strides = array<i32>} : memref<8x1xf32, #tpu.memory_space<vmem>>, vector<8x1xf32>,
    } else {
    }
    %c0_i32_2 = arith.constant 0 : i32
    %5 = arith.cmpi eq, %arg2, %c0_i32_2 : i32
    %6 = arith.extui %5 : i1 to i32
    %c0_i32_3 = arith.constant 0 : i32
    %7 = arith.cmpi ne, %6, %c0_i32_3 : i32
    scf.if %7 {
      %cst_27 = arith.constant 0xFF800000 : f32
      %47 = vector.broadcast %cst_27 : f32 to vector<8x1xf32>
      %c0_28 = arith.constant 0 : index
      %c0_29 = arith.constant 0 : index
      %48 = vector.load %arg9[%c0_28, %c0_29] : memref<8x1xf32, #tpu.memory_space<vmem>>, vector<8x1xf32>
      tpu.vector_store %arg9[%c0_28, %c0_29], %47 {strides = array<i32>} : memref<8x1xf32, #tpu.memory_space<vmem>>, vector<8x1xf32>,
      %cst_30 = arith.constant 0.000000e+00 : f32
      %49 = vector.broadcast %cst_30 : f32 to vector<8x1xf32>
      %c0_31 = arith.constant 0 : index
      %c0_32 = arith.constant 0 : index
      %50 = vector.load %arg10[%c0_31, %c0_32] : memref<8x1xf32, #tpu.memory_space<vmem>>, vector<8x1xf32>
      tpu.vector_store %arg10[%c0_31, %c0_32], %49 {strides = array<i32>} : memref<8x1xf32, #tpu.memory_space<vmem>>, vector<8x1xf32>,
      %cst_33 = arith.constant 0.000000e+00 : f32
      %51 = vector.broadcast %cst_33 : f32 to vector<8x1xf32>
      %c0_34 = arith.constant 0 : index
      %c0_35 = arith.constant 0 : index
      %52 = vector.load %arg11[%c0_34, %c0_35] : memref<8x1xf32, #tpu.memory_space<vmem>>, vector<8x1xf32>
      tpu.vector_store %arg11[%c0_34, %c0_35], %51 {strides = array<i32>} : memref<8x1xf32, #tpu.memory_space<vmem>>, vector<8x1xf32>,
    } else {
    }
    %c0 = arith.constant 0 : index
    %c0_4 = arith.constant 0 : index
    %8 = vector.load %arg3[%c0, %c0_4] : memref<8x32xf32, #tpu.memory_space<vmem>>, vector<8x32xf32>
    %c0_5 = arith.constant 0 : index
    %c0_6 = arith.constant 0 : index
    %9 = vector.load %arg4[%c0_5, %c0_6] : memref<8x1xi32, #tpu.memory_space<vmem>>, vector<8x1xi32>
    %10 = tpu.iota {dimensions = array<i32: 1>} : vector<8x32xi32>
    %c32_i32 = arith.constant 32 : i32
    %11 = arith.muli %arg2, %c32_i32 : i32
    %12 = vector.broadcast %11 : i32 to vector<8x32xi32>
    %13 = arith.addi %12, %10 : vector<8x32xi32>
    %14 = vector.broadcast %9 : vector<8x1xi32> to vector<8x32xi32>
    %15 = arith.cmpi eq, %13, %14 : vector<8x32xi32>
    %c0_7 = arith.constant 0 : index
    %c0_8 = arith.constant 0 : index
    %16 = vector.load %arg11[%c0_7, %c0_8] : memref<8x1xf32, #tpu.memory_space<vmem>>, vector<8x1xf32>
    %cst = arith.constant 0.000000e+00 : f32
    %17 = vector.broadcast %cst : f32 to vector<8x32xf32>
    %18 = arith.select %15, %8, %17 : vector<8x32xi1>, vector<8x32xf32>
    %cst_9 = arith.constant dense<0.000000e+00> : vector<8xf32>
    %19 = vector.multi_reduction <add>, %18, %cst_9 [1] : vector<8x32xf32> to vector<8xf32>
    %20 = vector.shape_cast %19 : vector<8xf32> to vector<8x1xf32>
    %21 = arith.addf %16, %20 : vector<8x1xf32>
    %c0_10 = arith.constant 0 : index
    %c0_11 = arith.constant 0 : index
    %22 = vector.load %arg11[%c0_10, %c0_11] : memref<8x1xf32, #tpu.memory_space<vmem>>, vector<8x1xf32>
    tpu.vector_store %arg11[%c0_10, %c0_11], %21 {strides = array<i32>} : memref<8x1xf32, #tpu.memory_space<vmem>>, vector<8x1xf32>,
    %c0_12 = arith.constant 0 : index
    %c0_13 = arith.constant 0 : index
    %23 = vector.load %arg9[%c0_12, %c0_13] : memref<8x1xf32, #tpu.memory_space<vmem>>, vector<8x1xf32>
    %cst_14 = arith.constant dense<0xFF800000> : vector<8xf32>
    %24 = vector.multi_reduction <maximumf>, %8, %cst_14 [1] : vector<8x32xf32> to vector<8xf32>
    %25 = vector.shape_cast %24 : vector<8xf32> to vector<8x1xf32>
    %26 = arith.maximumf %23, %25 : vector<8x1xf32>
    %c0_15 = arith.constant 0 : index
    %c0_16 = arith.constant 0 : index
    %27 = vector.load %arg10[%c0_15, %c0_16] : memref<8x1xf32, #tpu.memory_space<vmem>>, vector<8x1xf32>
    %28 = arith.subf %23, %26 : vector<8x1xf32>
    %29 = math.exp %28 : vector<8x1xf32>
    %30 = arith.mulf %27, %29 : vector<8x1xf32>
    %31 = vector.broadcast %26 : vector<8x1xf32> to vector<8x32xf32>
    %32 = arith.subf %8, %31 : vector<8x32xf32>
    %33 = math.exp %32 : vector<8x32xf32>
    %cst_17 = arith.constant dense<0.000000e+00> : vector<8xf32>
    %34 = vector.multi_reduction <add>, %33, %cst_17 [1] : vector<8x32xf32> to vector<8xf32>
    %35 = vector.shape_cast %34 : vector<8xf32> to vector<8x1xf32>
    %36 = arith.addf %30, %35 : vector<8x1xf32>
    %c0_18 = arith.constant 0 : index
    %c0_19 = arith.constant 0 : index
    %37 = vector.load %arg10[%c0_18, %c0_19] : memref<8x1xf32, #tpu.memory_space<vmem>>, vector<8x1xf32>
    tpu.vector_store %arg10[%c0_18, %c0_19], %36 {strides = array<i32>} : memref<8x1xf32, #tpu.memory_space<vmem>>, vector<8x1xf32>,
    %c0_20 = arith.constant 0 : index
    %c0_21 = arith.constant 0 : index
    %38 = vector.load %arg9[%c0_20, %c0_21] : memref<8x1xf32, #tpu.memory_space<vmem>>, vector<8x1xf32>
    tpu.vector_store %arg9[%c0_20, %c0_21], %26 {strides = array<i32>} : memref<8x1xf32, #tpu.memory_space<vmem>>, vector<8x1xf32>,
    %c0_i32_22 = arith.constant 0 : i32
    %39 = arith.cmpi eq, %arg2, %c0_i32_22 : i32
    %40 = arith.extui %39 : i1 to i32
    %c0_i32_23 = arith.constant 0 : i32
    %41 = arith.cmpi ne, %40, %c0_i32_23 : i32
    scf.if %41 {
      %c0_27 = arith.constant 0 : index
      %c0_28 = arith.constant 0 : index
      %47 = vector.load %arg9[%c0_27, %c0_28] : memref<8x1xf32, #tpu.memory_space<vmem>>, vector<8x1xf32>
      %c0_29 = arith.constant 0 : index
      %c0_30 = arith.constant 0 : index
      %48 = vector.load %arg10[%c0_29, %c0_30] : memref<8x1xf32, #tpu.memory_space<vmem>>, vector<8x1xf32>
      %49 = math.log %48 : vector<8x1xf32>
      %50 = arith.addf %47, %49 : vector<8x1xf32>
      %c0_31 = arith.constant 0 : index
      %c0_32 = arith.constant 0 : index
      %51 = vector.load %arg11[%c0_31, %c0_32] : memref<8x1xf32, #tpu.memory_space<vmem>>, vector<8x1xf32>
      %52 = arith.subf %50, %51 : vector<8x1xf32>
      %cst_33 = arith.constant 0.000000e+00 : f32
      %53 = vector.broadcast %cst_33 : f32 to vector<8x1xf32>
      %54 = arith.subf %53, %52 : vector<8x1xf32>
      %55 = math.exp %54 : vector<8x1xf32>
      %cst_34 = arith.constant 1.000000e+00 : f32
      %56 = vector.broadcast %cst_34 : f32 to vector<8x1xf32>
      %57 = arith.subf %56, %55 : vector<8x1xf32>
      %cst_35 = arith.constant 1.000000e-30 : f32
      %58 = vector.broadcast %cst_35 : f32 to vector<8x1xf32>
      %59 = arith.maximumf %57, %58 : vector<8x1xf32>
      %cst_36 = arith.constant 0.000000e+00 : f32
      %60 = vector.broadcast %cst_36 : f32 to vector<8x1xf32>
      %61 = arith.cmpf ole, %57, %60 : vector<8x1xf32>
      %c0_37 = arith.constant 0 : index
      %c0_38 = arith.constant 0 : index
      %62 = vector.load %arg6[%c0_37, %c0_38] : memref<8x1xf32, #tpu.memory_space<vmem>>, vector<8x1xf32>
      %63 = math.log %59 : vector<8x1xf32>
      %64 = arith.mulf %62, %63 : vector<8x1xf32>
      %65 = math.exp %64 : vector<8x1xf32>
      %cst_39 = arith.constant 0.000000e+00 : f32
      %66 = vector.broadcast %cst_39 : f32 to vector<8x1xf32>
      %67 = arith.select %61, %66, %65 : vector<8x1xi1>, vector<8x1xf32>
      %c0_40 = arith.constant 0 : index
      %c0_41 = arith.constant 0 : index
      %68 = vector.load %arg5[%c0_40, %c0_41] : memref<8x1xf32, #tpu.memory_space<vmem>>, vector<8x1xf32>
      %69 = arith.mulf %68, %67 : vector<8x1xf32>
      %70 = arith.mulf %69, %52 : vector<8x1xf32>
      %c0_42 = arith.constant 0 : index
      %71 = memref.load %arg7[%c0_42] : memref<1xf32, #tpu.memory_space<smem>>
      %cst_43 = arith.constant 0.000000e+00 : f32
      %cst_44 = arith.constant 1.000000e+00 : f32
      %72 = arith.maximumf %cst_43, %71 : f32
      %73 = arith.minimumf %cst_44, %72 : f32
      %74 = vector.broadcast %73 : f32 to vector<8x1xf32>
      %75 = arith.mulf %74, %70 : vector<8x1xf32>
      %cst_45 = arith.constant 1.000000e+00 : f32
      %76 = arith.subf %cst_45, %73 : f32
      %77 = vector.broadcast %76 : f32 to vector<8x1xf32>
      %78 = arith.mulf %77, %52 : vector<8x1xf32>
      %79 = arith.addf %75, %78 : vector<8x1xf32>
      %80 = tpu.iota {dimensions = array<i32: 0>} : vector<8x1xi32>
      %c1_i32 = arith.constant 1 : i32
      %81 = arith.muli %arg0, %c1_i32 : i32
      %82 = arith.addi %81, %arg1 : i32
      %c8_i32 = arith.constant 8 : i32
      %83 = arith.muli %82, %c8_i32 : i32
      %84 = vector.broadcast %83 : i32 to vector<8x1xi32>
      %85 = arith.addi %84, %80 : vector<8x1xi32>
      %c8_i32_46 = arith.constant 8 : i32
      %86 = vector.broadcast %c8_i32_46 : i32 to vector<8x1xi32>
      %87 = arith.cmpi slt, %85, %86 : vector<8x1xi32>
      %cst_47 = arith.constant 0.000000e+00 : f32
      %88 = vector.broadcast %cst_47 : f32 to vector<8x1xf32>
      %89 = arith.select %87, %79, %88 : vector<8x1xi1>, vector<8x1xf32>
      %c0_48 = arith.constant 0 : index
      %c0_49 = arith.constant 0 : index
      %90 = vector.load %arg12[%c0_48, %c0_49] : memref<8x1xf32, #tpu.memory_space<vmem>>, vector<8x1xf32>
      %91 = arith.addf %90, %89 : vector<8x1xf32>
      %c0_50 = arith.constant 0 : index
      %c0_51 = arith.constant 0 : index
      %92 = vector.load %arg12[%c0_50, %c0_51] : memref<8x1xf32, #tpu.memory_space<vmem>>, vector<8x1xf32>
      tpu.vector_store %arg12[%c0_50, %c0_51], %91 {strides = array<i32>} : memref<8x1xf32, #tpu.memory_space<vmem>>, vector<8x1xf32>,
    } else {
    }
    %c0_i32_24 = arith.constant 0 : i32
    %42 = arith.cmpi eq, %arg1, %c0_i32_24 : i32
    %c0_i32_25 = arith.constant 0 : i32
    %43 = arith.cmpi eq, %arg2, %c0_i32_25 : i32
    %44 = arith.andi %42, %43 : i1
    %45 = arith.extui %44 : i1 to i32
    %c0_i32_26 = arith.constant 0 : i32
    %46 = arith.cmpi ne, %45, %c0_i32_26 : i32
    scf.if %46 {
      %c0_27 = arith.constant 0 : index
      %c0_28 = arith.constant 0 : index
      %47 = vector.load %arg12[%c0_27, %c0_28] : memref<8x1xf32, #tpu.memory_space<vmem>>, vector<8x1xf32>
      %48 = vector.shape_cast %47 : vector<8x1xf32> to vector<1x8x1xf32>
      %cst_29 = arith.constant dense<0.000000e+00> : vector<1xf32>
      %49 = vector.multi_reduction <add>, %48, %cst_29 [1, 2] : vector<1x8x1xf32> to vector<1xf32>
      %50 = vector.shape_cast %49 : vector<1xf32> to vector<1x1x1xf32>
      %51 = vector.extract %50[0, 0, 0] : f32 from vector<1x1x1xf32>
      %52 = vector.broadcast %51 : f32 to vector<1x1x1xf32>
      %c0_30 = arith.constant 0 : index
      %c0_31 = arith.constant 0 : index
      %c0_32 = arith.constant 0 : index
      %53 = vector.load %arg8[%c0_30, %c0_31, %c0_32] : memref<1x1x1xf32, #tpu.memory_space<vmem>>, vector<1x1x1xf32>
      tpu.vector_store %arg8[%c0_30, %c0_31, %c0_32], %52 {strides = array<i32>} : memref<1x1x1xf32, #tpu.memory_space<vmem>>, vector<1x1x1xf32>,
    } else {
    }
    return
  }
  func.func @transform_0(%arg0: i32, %arg1: i32, %arg2: i32) -> (i32, i32) {
    %c1_i32 = arith.constant 1 : i32
    %0 = arith.muli %arg0, %c1_i32 : i32
    %1 = arith.addi %0, %arg1 : i32
    %c0_i32 = arith.constant 0 : i32
    return %1, %arg2 : i32, i32
  }
  func.func @transform_1(%arg0: i32, %arg1: i32, %arg2: i32) -> (i32, i32) {
    %c1_i32 = arith.constant 1 : i32
    %0 = arith.muli %arg0, %c1_i32 : i32
    %1 = arith.addi %0, %arg1 : i32
    %c0_i32 = arith.constant 0 : i32
    %c0_i32_0 = arith.constant 0 : i32
    return %1, %c0_i32 : i32, i32
  }
  func.func @transform_2(%arg0: i32, %arg1: i32, %arg2: i32) -> (i32, i32) {
    %c1_i32 = arith.constant 1 : i32
    %0 = arith.muli %arg0, %c1_i32 : i32
    %1 = arith.addi %0, %arg1 : i32
    %c0_i32 = arith.constant 0 : i32
    %c0_i32_0 = arith.constant 0 : i32
    return %1, %c0_i32 : i32, i32
  }
  func.func @transform_3(%arg0: i32, %arg1: i32, %arg2: i32) -> (i32, i32) {
    %c1_i32 = arith.constant 1 : i32
    %0 = arith.muli %arg0, %c1_i32 : i32
    %1 = arith.addi %0, %arg1 : i32
    %c0_i32 = arith.constant 0 : i32
    %c0_i32_0 = arith.constant 0 : i32
    return %1, %c0_i32 : i32, i32
  }
  func.func @transform_4(%arg0: i32, %arg1: i32, %arg2: i32) -> i32 {
    %c0_i32 = arith.constant 0 : i32
    %c0_i32_0 = arith.constant 0 : i32
    return %c0_i32 : i32
  }
  func.func @transform_5(%arg0: i32, %arg1: i32, %arg2: i32) -> (i32, i32, i32) {
    %c0_i32 = arith.constant 0 : i32
    %c0_i32_0 = arith.constant 0 : i32
    %c0_i32_1 = arith.constant 0 : i32
    return %arg0, %c0_i32, %c0_i32_0 : i32, i32, i32
  }
}

</mosaic_0001>

<llo_original>
// kernel: tpu_custom_call.1
$region0: #{tpu_custom_call.1}
  #allocation0 [shape = 'u32[]', space=smem, size = 0x4, offset = 0x4, fixed_abs, tag = 'smem constant byte address 0x4 - core index']
  #allocation1 [shape = 'u32[72,128]{1,0:T(1,128)}', space=vmem, size = 0x9000, scoped, tag = 'internal scratch']
  #allocation2 [shape = 'f32[8,1]{1,0:T(8,128)}', space=vmem, size = 0x1000, scoped, tag = 'scratch operand']
  #allocation3 [shape = 'f32[8,1]{1,0:T(8,128)}', space=vmem, size = 0x1000, scoped, tag = 'scratch operand']
  #allocation4 [shape = 'f32[8,1]{1,0:T(8,128)}', space=vmem, size = 0x1000, scoped, tag = 'scratch operand']
  #allocation5 [shape = 'f32[8,1]{1,0:T(8,128)}', space=vmem, size = 0x1000, scoped, tag = 'scratch operand']
  #allocation6 [shape = 'f32[1]{0:T(128)S(6)}', space=smem, size = 0x200, scoped, tag = 'scoped memory for tpu_custom_call.1']
  %s0 = inlined_call_operand.vmem [shape: f32[8,32], index: 0, kind: input, shape index: {}]
  %s1 = inlined_call_operand.vmem [shape: s32[8,1], index: 1, kind: input, shape index: {}]
  %s2 = inlined_call_operand.vmem [shape: f32[8,1], index: 2, kind: input, shape index: {}]
  %s3 = inlined_call_operand.vmem [shape: f32[8,1], index: 3, kind: input, shape index: {}]
  %s4 = inlined_call_operand.<no memory space> [shape: f32[1], index: 4, kind: input, shape index: {}]
  %s5 = inlined_call_operand.hbm [shape: f32[1,1,1], index: 5, kind: output, shape index: {}]
  %s6 = sld [smem:[#allocation0]]
  $region46: #{tpu_custom_call.1} parent=0
    _
  %s8 = ssub.s32 1, %s6
  %s9 = scalar_select 0, %s8, %s6
  %10 = sst [smem:[#allocation6]] %s4
  $region1: #{tpu_custom_call.1} parent=0
    #allocation7 [shape = 'u8[512]{0}', space=vmem, size = 0x400, scoped, tag = 'output window, operand 0, single buffered']
    #allocation8 [shape = 's32[1]{0}', space=sflag, size = 0x4, scoped, tag = 'scoped memory for tpu_custom_call.1']
    %11 = vsyncpa [#allocation8], 0
    // Predicated region
    $region2: #{tpu_custom_call.1} parent=1 // pred_check
      _
    $region3: #{tpu_custom_call.1} parent=1 // pred_check_branch
      %13 = sbr.rel (0) target = $region5
    $region4: #{tpu_custom_call.1} parent=1 // pred_region
      %s14 = sadd.s32 0, 0
      %p15 = scmp.lt.s32.totalorder %s14, 0
      %s16 = scalar_select %p15, %s14, 0
      %s17 = smul.addr %s16, 8
      %s18 = scalar_lea.vmem %s0, %s17
      %s19 = sadd.s32 0, 0
    $region5: #{tpu_custom_call.1} parent=1 // pred_fallthru
      _
    // Predicated region
    $region6: #{tpu_custom_call.1} parent=1 // pred_check
      _
    $region7: #{tpu_custom_call.1} parent=1 // pred_check_branch
      %21 = sbr.rel (0) target = $region9
    $region8: #{tpu_custom_call.1} parent=1 // pred_region
      %s22 = sadd.s32 0, 0
      %p23 = scmp.lt.s32.totalorder %s22, 0
      %s24 = scalar_select %p23, %s22, 0
      %s25 = smul.addr %s24, 8
      %s26 = scalar_lea.vmem %s1, %s25
      %s27 = sadd.s32 0, 0
    $region9: #{tpu_custom_call.1} parent=1 // pred_fallthru
      _
    // Predicated region
    $region10: #{tpu_custom_call.1} parent=1 // pred_check
      _
    $region11: #{tpu_custom_call.1} parent=1 // pred_check_branch
      %29 = sbr.rel (0) target = $region13
    $region12: #{tpu_custom_call.1} parent=1 // pred_region
      %s30 = sadd.s32 0, 0
      %p31 = scmp.lt.s32.totalorder %s30, 0
      %s32 = scalar_select %p31, %s30, 0
      %s33 = smul.addr %s32, 8
      %s34 = scalar_lea.vmem %s2, %s33
      %s35 = sadd.s32 0, 0
    $region13: #{tpu_custom_call.1} parent=1 // pred_fallthru
      _
    // Predicated region
    $region14: #{tpu_custom_call.1} parent=1 // pred_check
      _
    $region15: #{tpu_custom_call.1} parent=1 // pred_check_branch
      %37 = sbr.rel (0) target = $region17
    $region16: #{tpu_custom_call.1} parent=1 // pred_region
      %s38 = sadd.s32 0, 0
      %p39 = scmp.lt.s32.totalorder %s38, 0
      %s40 = scalar_select %p39, %s38, 0
      %s41 = smul.addr %s40, 8
      %s42 = scalar_lea.vmem %s3, %s41
      %s43 = sadd.s32 0, 0
    $region17: #{tpu_custom_call.1} parent=1 // pred_fallthru
      _
    // Predicated region
    $region18: #{tpu_custom_call.1} parent=1 // pred_check
      _
    $region19: #{tpu_custom_call.1} parent=1 // pred_check_branch
      %45 = sbr.rel (0) target = $region21
    $region20: #{tpu_custom_call.1} parent=1 // pred_region
      _
    $region21: #{tpu_custom_call.1} parent=1 // pred_fallthru
      _
    %s46 = sadd.s32 0, 0
    %p47 = scmp.lt.s32.totalorder %s46, 0
    %s48 = scalar_select %p47, %s46, 0
    %s49 = smul.addr %s48, 8
    %s50 = scalar_lea.vmem %s0, %s49
    %s51 = sadd.s32 0, 0
    %p52 = scmp.lt.s32.totalorder %s51, 0
    %s53 = scalar_select %p52, %s51, 0
    %s54 = smul.addr %s53, 8
    %s55 = scalar_lea.vmem %s1, %s54
    %s56 = sadd.s32 0, 0
    %p57 = scmp.lt.s32.totalorder %s56, 0
    %s58 = scalar_select %p57, %s56, 0
    %s59 = smul.addr %s58, 8
    %s60 = scalar_lea.vmem %s2, %s59
    %s61 = sadd.s32 0, 0
    %p62 = scmp.lt.s32.totalorder %s61, 0
    %s63 = scalar_select %p62, %s61, 0
    %s64 = smul.addr %s63, 8
    %s65 = scalar_lea.vmem %s3, %s64
    %s66 = sadd.s32 0, 0
    %p67 = scmp.lt.s32.totalorder %s66, 0
    %s68 = scalar_select %p67, %s66, 0
    %s69 = smul.addr %s68, 8
    %s70 = scalar_lea.vmem %s0, %s69
    %s71 = sadd.s32 0, 0
    %s72 = sadd.s32 0, 0
    %p73 = scmp.lt.s32.totalorder %s72, 0
    %s74 = scalar_select %p73, %s72, 0
    %s75 = smul.addr %s74, 8
    %s76 = scalar_lea.vmem %s1, %s75
    %s77 = sadd.s32 0, 0
    %s78 = sadd.s32 0, 0
    %p79 = scmp.lt.s32.totalorder %s78, 0
    %s80 = scalar_select %p79, %s78, 0
    %s81 = smul.addr %s80, 8
    %s82 = scalar_lea.vmem %s2, %s81
    %s83 = sadd.s32 0, 0
    %s84 = sadd.s32 0, 0
    %p85 = scmp.lt.s32.totalorder %s84, 0
    %s86 = scalar_select %p85, %s84, 0
    %s87 = smul.addr %s86, 8
    %s88 = scalar_lea.vmem %s3, %s87
    %s89 = sadd.s32 0, 0
    %p90 = scmp.eq.s32.totalorder 0, 0
    %p91 = scmp.eq.s32.totalorder 0, 0
    %p92 = pnand %p90, %p91
    %p93 = pneg %p92
    // Predicated region
    $region22: #{tpu_custom_call.1} parent=1 // pred_check
      _
    $region23: #{tpu_custom_call.1} parent=1 // pred_check_branch
      %95 = sbr.rel (%p92) target = $region25
    $region24: #{tpu_custom_call.1} parent=1 // pred_region
      %vm96 = vcmask 7168
      %97 = vst.msk [vmem:[#allocation5] sm:$0xff] %vm96, 0.0
    $region25: #{tpu_custom_call.1} parent=1 // pred_fallthru
      _
    // Predicated region
    $region26: #{tpu_custom_call.1} parent=1 // pred_check
      %p98 = pneg %p91
    $region27: #{tpu_custom_call.1} parent=1 // pred_check_branch
      %100 = sbr.rel (%p98) target = $region29
    $region28: #{tpu_custom_call.1} parent=1 // pred_region
      %vm101 = vcmask 7168
      %102 = vst.msk [vmem:[#allocation2] sm:$0xff] %vm101, -inf
      %103 = vst.msk [vmem:[#allocation3] sm:$0xff] %vm101, 0.0
      %104 = vst.msk [vmem:[#allocation4] sm:$0xff] %vm101, 0.0
    $region29: #{tpu_custom_call.1} parent=1 // pred_fallthru
      _
    %v105 = vld [vmem:[%s70] sm:$0xff]
    %v106 = vld [vmem:[%s76] sm:$0xff]
    %v107 = vlaneseq
    %v108 = vand.u32 %v107, 127
    %s109 = smul.u32 0, 32
    %v110 = vstv %s109
    %v111 = vadd.s32 %v110, %v108
    %112 = vset.pattern.permute.xlu0 0
    %113 = vperm.xlu0 %112, %v106
    %v114 = vpop.permute.xlu0 %113
    %vm115 = vcmp.eq.s32.totalorder %v111, %v114
    %v116 = vld [vmem:[#allocation4] sm:$0xff]
    %v117 = vsel %vm115, %v105, 0.0
    %vm118 = vcmask 261120
    %v119 = vsel %vm118, %v117, 0.0
    %120 = vadd.xlane.f32.xlu0 %v119
    %v121 = vpop.xlane.xlu0 %120
    %v122 = vadd.f32 %v116, %v121
    %vm123 = vcmask 7168
    %124 = vst.msk [vmem:[#allocation4] sm:$0xff] %vm123, %v122
    %v125 = vld [vmem:[#allocation2] sm:$0xff]
    %v126 = vsel %vm118, %v105, -inf
    %127 = vmax.xlane.f32.xlu0 %v126
    %v128 = vpop.xlane.xlu0 %127
    %v129 = vmax.f32 %v125, %v128
    %v130 = vld [vmem:[#allocation3] sm:$0xff]
    %v131 = vsub.f32 %v125, %v129
    %v132 = vmul.f32 %v131, 1.442695
    %v133 = vpow.pop %v132
    %v134 = vmul.f32 %v130, %v133
    %136 = vset.pattern.permute.xlu0 0
    %137 = vperm.xlu0 %136, %v129
    %v138 = vpop.permute.xlu0 %137
    %v140 = vsub.f32 %v105, %v138
    %v141 = vmul.f32 %v140, 1.442695
    %v142 = vpow.pop %v141
    %v143 = vsel %vm118, %v142, 0.0
    %144 = vadd.xlane.f32.xlu0 %v143
    %v145 = vpop.xlane.xlu0 %144
    %v146 = vadd.f32 %v134, %v145
    %147 = vst.msk [vmem:[#allocation3] sm:$0xff] %vm123, %v146
    %148 = vst.msk [vmem:[#allocation2] sm:$0xff] %vm123, %v129
    // Predicated region
    $region30: #{tpu_custom_call.1} parent=1 // pred_check
      %p149 = pneg %p91
    $region31: #{tpu_custom_call.1} parent=1 // pred_check_branch
      %151 = sbr.rel (%p149) target = $region33
    $region32: #{tpu_custom_call.1} parent=1 // pred_region
      %v152 = vld [vmem:[#allocation2] sm:$0xff]
      %v153 = vld [vmem:[#allocation3] sm:$0xff]
      %v154 = vlog2.pop %v153
      %v155 = vmul.f32 %v154, 0.6931472
      %v156 = vadd.f32 %v152, %v155
      %v157 = vld [vmem:[#allocation4] sm:$0xff]
      %v158 = vsub.f32 %v156, %v157
      %v159 = vsub.f32 0.0, %v158
      %v160 = vmul.f32 %v159, 1.442695
      %v161 = vpow.pop %v160
      %v162 = vsub.f32 1.0, %v161
      %v163 = vmax.f32 %v162, 1e-30
      %vm164 = vcmp.le.f32.partialorder %v162, 0.0
      %v165 = vld [vmem:[%s88] sm:$0xff]
      %v166 = vlog2.pop %v163
      %v167 = vmul.f32 %v166, 0.6931472
      %v168 = vmul.f32 %v165, %v167
      %v169 = vmul.f32 %v168, 1.442695
      %v170 = vpow.pop %v169
      %v171 = vsel %vm164, 0.0, %v170
      %v172 = vld [vmem:[%s82] sm:$0xff]
      %v173 = vmul.f32 %v172, %v171
      %v174 = vmul.f32 %v173, %v158
      %s175 = sld [smem:[#allocation6]]
      %s176 = smax.f32 %s175, 0.0
      %s177 = smin.f32 %s176, 1.0
      %v178 = vstv %s177
      %v179 = vmul.f32 %v178, %v174
      %s180 = ssub.f32 1.0, %s177
      %v181 = vstv %s180
      %v182 = vmul.f32 %v181, %v158
      %v183 = vadd.f32 %v179, %v182
      %v184 = vlaneseq
      %v185 = vshrl.u32 %v184, 7
      %s186 = sadd.s32 0, 0
      %s187 = smul.u32 %s186, 8
      %v188 = vstv %s187
      %v189 = vadd.s32 %v188, %v185
      %vm190 = vcmp.lt.s32.totalorder %v189, 8
      %v191 = vsel %vm190, %v183, 0.0
      %v192 = vld [vmem:[#allocation5] sm:$0xff]
      %v193 = vadd.f32 %v192, %v191
      %194 = vst.msk [vmem:[#allocation5] sm:$0xff] %vm123, %v193
    $region33: #{tpu_custom_call.1} parent=1 // pred_fallthru
      _
    // Predicated region
    $region34: #{tpu_custom_call.1} parent=1 // pred_check
      _
    $region35: #{tpu_custom_call.1} parent=1 // pred_check_branch
      %196 = sbr.rel (%p92) target = $region37
    $region36: #{tpu_custom_call.1} parent=1 // pred_region
      %v197 = vld [vmem:[#allocation5] sm:$0xff]
      %v198 = vsel %vm123, %v197, 0.0
      %199 = vadd.xlane.f32.xlu0 %v198
      %v200 = vpop.xlane.xlu0 %199
      %v201 = vrot.slane %v200, 4
      %v202 = vadd.f32 %v200, %v201
      %v203 = vrot.slane %v202, 2
      %v204 = vadd.f32 %v202, %v203
      %v205 = vrot.slane %v204, 1
      %v206 = vadd.f32 %v204, %v205
      %s207 = vtos %v206
      %v208 = vstv %s207
      %vm209 = vcmask 0
      %210 = vst.msk [vmem:[#allocation7] sm:$0x1] %vm209, %v208
    $region37: #{tpu_custom_call.1} parent=1 // pred_fallthru
      _
    // Predicated region
    $region38: #{tpu_custom_call.1} parent=1 // pred_check
      _
    $region39: #{tpu_custom_call.1} parent=1 // pred_check_branch
      %212 = sbr.rel (0) target = $region41
    $region40: #{tpu_custom_call.1} parent=1 // pred_region
      %214 = vsyncadd [#allocation8], 0
      %s216 = sshll.u32 [#allocation7], 4
      %s217 = int_to_ptr.vmem [resolvable:$true] %s216
      %s218 = sshll.u32 %s5, 4
      %s219 = int_to_ptr.hbm [resolvable:$true] %s218
      %221 = dma.vmem_to_hbm [thread:$0]  %s217, 16, %s219, [#allocation8]
    $region41: #{tpu_custom_call.1} parent=1 // pred_fallthru
      _
    // Predicated region
    $region42: #{tpu_custom_call.1} parent=1 // pred_check
      _
    $region43: #{tpu_custom_call.1} parent=1 // pred_check_branch
      %223 = sbr.rel (0) target = $region45
    $region44: #{tpu_custom_call.1} parent=1 // pred_region
      %225 = dma.done [#allocation8], 16
    $region45: #{tpu_custom_call.1} parent=1 // pred_fallthru
      _
    %226 = vsyncpa [#allocation8], 1

</llo_original>
